<compile_context>
chip_gen: v7x
topology: tpu7x:2x2x1
jax: 0.10.0
libtpu: 0.0.40
codegen_flags: <defaults>
</compile_context>

<pallas_src>
import jax
import jax.numpy as jnp
from jax.experimental import pallas as pl
from jax.experimental.pallas import tpu as pltpu

_PALLAS_MIN_ELEMS = 8192  # below this, pure-XLA elementwise beats kernel launch cost


def _make_universe_kernel(n_func: int):
    """Builds a kernel specialized on the (static, tiny) number of functions."""

    def kernel(x_ref, mean_ref, coef_ref, o_ref):
        # x_ref:    (TR, TC)     float32 VMEM  (lane-dense slab of B*L values)
        # mean_ref: (F,)         float32 SMEM  (Gauss centers)
        # coef_ref: (F,)         float32 SMEM  (-1 / (2 * std^2))
        # o_ref:    (F, TR, TC)  out_dtype VMEM
        x = x_ref[...]
        # F is tiny and static -> fully unrolled; scalar-from-SMEM broadcast is
        # free on the VPU; no per-element divide (coef precomputed).
        for f in range(n_func):
            d = x - mean_ref[f]
            # Keep sub/mul/exp in f32 (v5e has no bf16 VPU/EUP); cast at the store.
            # TODO(synk): on v7x the EUP supports bf16 — casting d*d*coef to bf16
            # before jnp.exp would ~2x exp throughput if downstream precision allows.
            o_ref[f] = jnp.exp(d * d * coef_ref[f]).astype(o_ref.dtype)

    return kernel


def _vmem_capacity_bytes() -> int:
    try:
        return int(pltpu.get_tpu_info().vmem_capacity_bytes)
    except Exception:
        return 64 << 20  # conservative v7x-class per-core assumption


def _round_up(v: int, m: int) -> int:
    return -(-v // m) * m


def _choose_tiling(n: int, n_func: int, out_bytes: int):
    """Pick (TR, TC, n_blocks, rows_total, vmem_limit) for the flattened slab."""
    cap = _vmem_capacity_bytes()
    # Per-grid-step VMEM: double-buffered f32 input + double-buffered output;
    # keep well under the per-core capacity (64 MiB on v7x, 128 MiB v5e/v6e).
    budget = min(cap // 3, 40 << 20)
    TC = 1024
    # Output block's second-to-last dim must respect the packed-dtype tiling.
    row_align = 8 if out_bytes >= 4 else 16
    per_row = 2 * TC * (4 + n_func * out_bytes)
    max_rows = max(row_align, (budget // per_row) // row_align * row_align)
    max_rows = min(max_rows, 512)  # bound per-step latency / last-block padding
    rows_needed = _round_up(pl.cdiv(n, TC), row_align)
    n_blocks = pl.cdiv(rows_needed, max_rows)
    if n_blocks == 1 and rows_needed >= 2 * row_align:
        n_blocks = 2  # let v7x's two TensorCores both work on the "parallel" axis
    TR = _round_up(pl.cdiv(rows_needed, n_blocks), row_align)
    rows_total = n_blocks * TR
    vmem_use = 2 * TR * TC * 4 + 2 * n_func * TR * TC * out_bytes
    vmem_limit = int(min(cap, max(32 << 20, vmem_use * 2 + (2 << 20))))
    return TR, TC, n_blocks, rows_total, vmem_limit


def universe_forward(x, means, stds, *, out_dtype=jnp.float32, output_layout="blf"):
    """x: (B, L, 1); means/stds: (F,).

    output_layout:
      "blf" -> (B, L, F)  (matches the PyTorch module; needs a wrapper transpose)
      "fbl" -> (F, B, L)  (kernel-native; lets the pyanfis consumer fuse the
                           permutation instead of materializing a lane-sparse
                           (B, L, F) array — the single biggest end-to-end win)
    """
    B, L, one = x.shape
    assert one == 1, "Universe expects input of shape [n_batches, n_lines, 1]"
    F = int(means.shape[0])
    N = B * L

    xf = x.reshape(N).astype(jnp.float32)
    mean = means.astype(jnp.float32)
    std = stds.astype(jnp.float32)
    # Hoist the divide out of the per-element path: exp(d*d * coef).
    coef = -1.0 / (2.0 * std * std)

    if N <= _PALLAS_MIN_ELEMS:
        # Kernel launch / grid / DMA fixed cost dominates tiny problems; a pure
        # XLA elementwise fusion is faster and avoids padding to an (8,128) tile.
        out_fn = jnp.exp(coef[:, None] * (xf[None, :] - mean[:, None]) ** 2)
        out_fn = out_fn.astype(out_dtype)          # (F, N)
    else:
        out_bytes = jnp.dtype(out_dtype).itemsize
        TR, TC, n_blocks, rows_total, vmem_limit = _choose_tiling(N, F, out_bytes)
        padded = rows_total * TC
        if padded != N:
            xf = jnp.pad(xf, (0, padded - N))
        x2d = xf.reshape(rows_total, TC)

        out = pl.pallas_call(
            _make_universe_kernel(F),
            out_shape=jax.ShapeDtypeStruct((F, rows_total, TC), out_dtype),
            grid=(n_blocks,),
            in_specs=[
                pl.BlockSpec((TR, TC), lambda i: (i, 0)),
                pl.BlockSpec(memory_space=pltpu.MemorySpace.SMEM),
                pl.BlockSpec(memory_space=pltpu.MemorySpace.SMEM),
            ],
            out_specs=pl.BlockSpec((F, TR, TC), lambda i: (0, i, 0)),
            compiler_params=pltpu.CompilerParams(
                dimension_semantics=("parallel",),
                vmem_limit_bytes=vmem_limit),
        )(x2d, mean, coef)

        out_fn = out.reshape(F, padded)[:, :N]     # (F, N)

    if output_layout == "fbl":
        return out_fn.reshape(F, B, L)
    # (B, L, F) to match the PyTorch module; done in out_dtype so a bf16 choice
    # also halves the layout-plumbing traffic.
    return jnp.transpose(out_fn, (1, 0)).reshape(B, L, F)


def automf_params(u_min, u_max, n_func):
    """Replicates Universe.get_centers_and_intervals / automf.

    Note: like the PyTorch reference, n_func == 1 divides by zero here, and
    std == 0 would produce an invalid coefficient downstream.
    """
    interval = (u_max - u_min) / (n_func - 1)
    centers = jnp.array([u_min + interval * i for i in range(n_func)],
                        dtype=jnp.float32)
    intervals = jnp.full((n_func,), interval, dtype=jnp.float32)
    return centers, intervals


if __name__ == "__main__":
    key = jax.random.PRNGKey(0)
    u_min, u_max = 0.0, 10.0
    n_func = 4
    means, stds = automf_params(u_min, u_max, n_func)

    def reference(x):
        return jnp.concatenate(
            [jnp.exp(-((x - m) ** 2) / (2.0 * s ** 2)) for m, s in zip(means, stds)],
            axis=2)

    k1, k2 = jax.random.split(key)

    # 1) Tiny demo shape from the module docstring (short-circuits to plain XLA).
    x_small = jax.random.uniform(k1, (2, 8, 1), jnp.float32, u_min, u_max)
    out_small = jax.block_until_ready(universe_forward(x_small, means, stds))
    assert out_small.shape == (2, 8, n_func)
    assert jnp.allclose(out_small, reference(x_small), atol=1e-6, rtol=1e-6)

    # 2) Shape large enough to exercise the Pallas kernel (non-multiple of the
    #    tile, so the padding path is covered), f32 output.
    B, L = 3, 5000
    x_big = jax.random.uniform(k2, (B, L, 1), jnp.float32, u_min, u_max)
    ref_big = reference(x_big)
    out_f32 = jax.block_until_ready(universe_forward(x_big, means, stds))
    assert out_f32.shape == (B, L, n_func)
    assert jnp.allclose(out_f32, ref_big, atol=1e-6, rtol=1e-6)

    # 3) bf16 output store (mem-bound bandwidth win on v6e/v7x); f32 math inside.
    out_bf16 = jax.block_until_ready(
        universe_forward(x_big, means, stds, out_dtype=jnp.bfloat16))
    assert out_bf16.dtype == jnp.bfloat16
    assert jnp.allclose(out_bf16.astype(jnp.float32), ref_big, atol=1.5e-2, rtol=2e-2)

    # 4) Kernel-native (F, B, L) layout — avoids the lane-sparse transpose.
    out_fbl = jax.block_until_ready(
        universe_forward(x_big, means, stds, output_layout="fbl"))
    assert out_fbl.shape == (n_func, B, L)
    assert jnp.allclose(jnp.transpose(out_fbl, (1, 2, 0)), ref_big,
                        atol=1e-6, rtol=1e-6)

    print("KERNEL_OK")
</pallas_src>

<mosaic_0001>
module attributes {stable_mosaic.version = 11 : i64} {
  func.func @kernel(%arg0: i32, %arg1: memref<8x1024xf32, #tpu.memory_space<vmem>>, %arg2: memref<4xf32, #tpu.memory_space<smem>>, %arg3: memref<4xf32, #tpu.memory_space<smem>>, %arg4: memref<4x8x1024xf32, #tpu.memory_space<vmem>>) attributes {dimension_semantics = [#tpu.dimension_semantics<parallel>], iteration_bounds = array<i64: 2>, scalar_prefetch = 0 : i64, scratch_operands = 0 : i64, tpu.core_type = #tpu.core_type<tc>, window_params = [{transform_indices = @transform_0, window_bounds = array<i64: 8, 1024>}, {transform_indices = @transform_1, window_bounds = array<i64: 4>}, {transform_indices = @transform_2, window_bounds = array<i64: 4>}, {transform_indices = @transform_3, window_bounds = array<i64: 4, 8, 1024>}]} {
    %c0 = arith.constant 0 : index
    %c0_0 = arith.constant 0 : index
    %0 = vector.load %arg1[%c0, %c0_0] : memref<8x1024xf32, #tpu.memory_space<vmem>>, vector<8x1024xf32>
    %c0_1 = arith.constant 0 : index
    %1 = memref.load %arg2[%c0_1] : memref<4xf32, #tpu.memory_space<smem>>
    %2 = vector.broadcast %1 : f32 to vector<8x1024xf32>
    %3 = arith.subf %0, %2 : vector<8x1024xf32>
    %4 = arith.mulf %3, %3 : vector<8x1024xf32>
    %c0_2 = arith.constant 0 : index
    %5 = memref.load %arg3[%c0_2] : memref<4xf32, #tpu.memory_space<smem>>
    %6 = vector.broadcast %5 : f32 to vector<8x1024xf32>
    %7 = arith.mulf %4, %6 : vector<8x1024xf32>
    %8 = math.exp %7 : vector<8x1024xf32>
    %c0_3 = arith.constant 0 : index
    %c0_4 = arith.constant 0 : index
    %c0_5 = arith.constant 0 : index
    %9 = vector.load %arg4[%c0_3, %c0_4, %c0_5] : memref<4x8x1024xf32, #tpu.memory_space<vmem>>, vector<1x8x1024xf32>
    %10 = vector.shape_cast %9 : vector<1x8x1024xf32> to vector<8x1024xf32>
    %11 = vector.shape_cast %8 : vector<8x1024xf32> to vector<1x8x1024xf32>
    tpu.vector_store %arg4[%c0_3, %c0_4, %c0_5], %11 {strides = array<i32>} : memref<4x8x1024xf32, #tpu.memory_space<vmem>>, vector<1x8x1024xf32>,
    %c1 = arith.constant 1 : index
    %12 = memref.load %arg2[%c1] : memref<4xf32, #tpu.memory_space<smem>>
    %13 = vector.broadcast %12 : f32 to vector<8x1024xf32>
    %14 = arith.subf %0, %13 : vector<8x1024xf32>
    %15 = arith.mulf %14, %14 : vector<8x1024xf32>
    %c1_6 = arith.constant 1 : index
    %16 = memref.load %arg3[%c1_6] : memref<4xf32, #tpu.memory_space<smem>>
    %17 = vector.broadcast %16 : f32 to vector<8x1024xf32>
    %18 = arith.mulf %15, %17 : vector<8x1024xf32>
    %19 = math.exp %18 : vector<8x1024xf32>
    %c1_7 = arith.constant 1 : index
    %c0_8 = arith.constant 0 : index
    %c0_9 = arith.constant 0 : index
    %20 = vector.load %arg4[%c1_7, %c0_8, %c0_9] : memref<4x8x1024xf32, #tpu.memory_space<vmem>>, vector<1x8x1024xf32>
    %21 = vector.shape_cast %20 : vector<1x8x1024xf32> to vector<8x1024xf32>
    %22 = vector.shape_cast %19 : vector<8x1024xf32> to vector<1x8x1024xf32>
    tpu.vector_store %arg4[%c1_7, %c0_8, %c0_9], %22 {strides = array<i32>} : memref<4x8x1024xf32, #tpu.memory_space<vmem>>, vector<1x8x1024xf32>,
    %c2 = arith.constant 2 : index
    %23 = memref.load %arg2[%c2] : memref<4xf32, #tpu.memory_space<smem>>
    %24 = vector.broadcast %23 : f32 to vector<8x1024xf32>
    %25 = arith.subf %0, %24 : vector<8x1024xf32>
    %26 = arith.mulf %25, %25 : vector<8x1024xf32>
    %c2_10 = arith.constant 2 : index
    %27 = memref.load %arg3[%c2_10] : memref<4xf32, #tpu.memory_space<smem>>
    %28 = vector.broadcast %27 : f32 to vector<8x1024xf32>
    %29 = arith.mulf %26, %28 : vector<8x1024xf32>
    %30 = math.exp %29 : vector<8x1024xf32>
    %c2_11 = arith.constant 2 : index
    %c0_12 = arith.constant 0 : index
    %c0_13 = arith.constant 0 : index
    %31 = vector.load %arg4[%c2_11, %c0_12, %c0_13] : memref<4x8x1024xf32, #tpu.memory_space<vmem>>, vector<1x8x1024xf32>
    %32 = vector.shape_cast %31 : vector<1x8x1024xf32> to vector<8x1024xf32>
    %33 = vector.shape_cast %30 : vector<8x1024xf32> to vector<1x8x1024xf32>
    tpu.vector_store %arg4[%c2_11, %c0_12, %c0_13], %33 {strides = array<i32>} : memref<4x8x1024xf32, #tpu.memory_space<vmem>>, vector<1x8x1024xf32>,
    %c3 = arith.constant 3 : index
    %34 = memref.load %arg2[%c3] : memref<4xf32, #tpu.memory_space<smem>>
    %35 = vector.broadcast %34 : f32 to vector<8x1024xf32>
    %36 = arith.subf %0, %35 : vector<8x1024xf32>
    %37 = arith.mulf %36, %36 : vector<8x1024xf32>
    %c3_14 = arith.constant 3 : index
    %38 = memref.load %arg3[%c3_14] : memref<4xf32, #tpu.memory_space<smem>>
    %39 = vector.broadcast %38 : f32 to vector<8x1024xf32>
    %40 = arith.mulf %37, %39 : vector<8x1024xf32>
    %41 = math.exp %40 : vector<8x1024xf32>
    %c3_15 = arith.constant 3 : index
    %c0_16 = arith.constant 0 : index
    %c0_17 = arith.constant 0 : index
    %42 = vector.load %arg4[%c3_15, %c0_16, %c0_17] : memref<4x8x1024xf32, #tpu.memory_space<vmem>>, vector<1x8x1024xf32>
    %43 = vector.shape_cast %42 : vector<1x8x1024xf32> to vector<8x1024xf32>
    %44 = vector.shape_cast %41 : vector<8x1024xf32> to vector<1x8x1024xf32>
    tpu.vector_store %arg4[%c3_15, %c0_16, %c0_17], %44 {strides = array<i32>} : memref<4x8x1024xf32, #tpu.memory_space<vmem>>, vector<1x8x1024xf32>,
    return
  }
  func.func @transform_0(%arg0: i32) -> (i32, i32) {
    %c0_i32 = arith.constant 0 : i32
    %c0_i32_0 = arith.constant 0 : i32
    return %arg0, %c0_i32 : i32, i32
  }
  func.func @transform_1(%arg0: i32) -> i32 {
    %c0_i32 = arith.constant 0 : i32
    %c0_i32_0 = arith.constant 0 : i32
    return %c0_i32 : i32
  }
  func.func @transform_2(%arg0: i32) -> i32 {
    %c0_i32 = arith.constant 0 : i32
    %c0_i32_0 = arith.constant 0 : i32
    return %c0_i32 : i32
  }
  func.func @transform_3(%arg0: i32) -> (i32, i32, i32) {
    %c0_i32 = arith.constant 0 : i32
    %c0_i32_0 = arith.constant 0 : i32
    %c0_i32_1 = arith.constant 0 : i32
    return %c0_i32, %arg0, %c0_i32_0 : i32, i32, i32
  }
}

</mosaic_0001>

<llo_original>
// kernel: tpu_custom_call.1
$region0: #{tpu_custom_call.1}
  #allocation0 [shape = 'u32[]', space=smem, size = 0x4, offset = 0x4, fixed_abs, tag = 'smem constant byte address 0x4 - core index']
  #allocation1 [shape = 'u32[144,128]{1,0:T(1,128)}', space=vmem, size = 0x12000, scoped, tag = 'internal scratch']
  %s0 = inlined_call_operand.hbm [shape: f32[16,1024], index: 0, kind: input, shape index: {}]
  %s1 = inlined_call_operand.vmem [shape: f32[4], index: 1, kind: input, shape index: {}]
  %s2 = inlined_call_operand.vmem [shape: f32[4], index: 2, kind: input, shape index: {}]
  %s3 = inlined_call_operand.hbm [shape: f32[4,16,1024], index: 3, kind: output, shape index: {}]
  %s4 = sld [smem:[#allocation0]]
  $region57: #{tpu_custom_call.1} parent=0
    _
  %s6 = ssub.s32 1, %s4
  %s7 = scalar_select 0, %s6, %s4
  $region1: #{tpu_custom_call.1} parent=0
    #allocation2 [shape = 'u8[65536]{0}', space=vmem, size = 0x10000, scoped, tag = 'input window, operand 0']
    #allocation3 [shape = 's32[2]{0}', space=sflag, size = 0x8, scoped, tag = 'scoped memory for tpu_custom_call.1']
    #allocation4 [shape = 's32[2]{0}', space=sflag, size = 0x8, scoped, tag = 'scoped memory for tpu_custom_call.1']
    #allocation5 [shape = 's32[2]{0}', space=sflag, size = 0x8, scoped, tag = 'scoped memory for tpu_custom_call.1']
    #allocation6 [shape = 'u8[512]{0}', space=smem, size = 0x200, scoped, tag = 'input window, operand 1, single buffered']
    #allocation7 [shape = 'u8[512]{0}', space=smem, size = 0x200, scoped, tag = 'input window, operand 2, single buffered']
    #allocation8 [shape = 's32[1]{0}', space=sflag, size = 0x4, scoped, tag = 'scoped memory for tpu_custom_call.1']
    #allocation9 [shape = 'u8[262144]{0}', space=vmem, size = 0x40000, scoped, tag = 'output window, operand 0']
    %8 = vsyncpa [#allocation3], 0
    %s9 = scalar_lea.sflag [#allocation3], 1
    %10 = vsyncpa %s9, 0
    %11 = vsyncpa [#allocation5], 0
    %12 = vsyncpa [#allocation8], 0
    %13 = vsyncpa [#allocation4], 0
    %s14 = scalar_lea.sflag [#allocation4], 1
    %15 = vsyncpa %s14, 0
    loop: start=0, step=1, limit=4
    $region2: #{tpu_custom_call.1} parent=1 // loop_pre_header
      _
    $region3: #{tpu_custom_call.1} parent=1 // loop_header
      %s17 = sphi 0, %s21
      %p18 = scmp.ge.s32.totalorder %s17, 4
      %s27 = sphi 0, %s29
      %s30 = sphi 0, %s27
      %s31 = sphi 0, %s30
      %s47 = sphi 0, %s31
      %s51 = sphi 0, %s51
      %s53 = sphi 0, %s51
      %s54 = sphi 0, %s53
      %s68 = sphi 0, %s54
      %s72 = sphi 0, %s72
      %s74 = sphi 0, %s72
      %s75 = sphi 0, %s74
      %s89 = sphi 0, %s75
      %s95 = sphi 0, %s97
      %s98 = sphi 0, %s95
      %s99 = sphi 0, %s98
      %s115 = sphi 0, %s99
    $region4: #{tpu_custom_call.1} parent=1 // loop_header_branch
      %20 = sbr.rel (%p18) target = $region8
    $region5: #{tpu_custom_call.1} parent=1 // loop_body
      %s22 = ssub.s32 %s17, 1
      %s23 = ssub.s32 %s17, 2
      %s24 = sadd.s32 %s17, 1
      %s25 = ssub.s32 %s17, %s24
      %p26 = scmp.eq.s32.totalorder %s25, 0
      %s28 = sadd.s32 %s27, 1
      %s29 = scalar_select %p26, %s27, %s28
      %p32 = pneg %p26
      %p33 = scmp.eq.s32.totalorder %s17, 1
      %p34 = por %p32, %p33
      %p35 = scmp.ne.s32.totalorder %s27, %s30
      %p36 = scmp.eq.s32.totalorder %s17, 0
      %p37 = por %p35, %p36
      %p38 = scmp.ne.s32.totalorder %s27, %s30
      %p39 = scmp.eq.s32.totalorder %s22, 1
      %p40 = por %p38, %p39
      %p41 = scmp.ne.s32.totalorder %s30, %s31
      %p42 = scmp.eq.s32.totalorder %s22, 0
      %p43 = por %p41, %p42
      %p44 = scmp.ne.s32.totalorder %s30, %s31
      %p45 = scmp.eq.s32.totalorder %s23, 1
      %p46 = por %p44, %p45
      %p48 = scmp.ne.s32.totalorder %s31, %s47
      %p49 = scmp.eq.s32.totalorder %s23, 0
      %p50 = por %p48, %p49
      %s52 = sadd.s32 %s51, 1
      %p55 = scmp.eq.s32.totalorder %s17, 1
      %p56 = scmp.ne.s32.totalorder %s51, %s53
      %p57 = scmp.eq.s32.totalorder %s17, 0
      %p58 = por %p56, %p57
      %p59 = scmp.ne.s32.totalorder %s51, %s53
      %p60 = scmp.eq.s32.totalorder %s22, 1
      %p61 = por %p59, %p60
      %p62 = scmp.ne.s32.totalorder %s53, %s54
      %p63 = scmp.eq.s32.totalorder %s22, 0
      %p64 = por %p62, %p63
      %p65 = scmp.ne.s32.totalorder %s53, %s54
      %p66 = scmp.eq.s32.totalorder %s23, 1
      %p67 = por %p65, %p66
      %p69 = scmp.ne.s32.totalorder %s54, %s68
      %p70 = scmp.eq.s32.totalorder %s23, 0
      %p71 = por %p69, %p70
      %s73 = sadd.s32 %s72, 1
      %p76 = scmp.eq.s32.totalorder %s17, 1
      %p77 = scmp.ne.s32.totalorder %s72, %s74
      %p78 = scmp.eq.s32.totalorder %s17, 0
      %p79 = por %p77, %p78
      %p80 = scmp.ne.s32.totalorder %s72, %s74
      %p81 = scmp.eq.s32.totalorder %s22, 1
      %p82 = por %p80, %p81
      %p83 = scmp.ne.s32.totalorder %s74, %s75
      %p84 = scmp.eq.s32.totalorder %s22, 0
      %p85 = por %p83, %p84
      %p86 = scmp.ne.s32.totalorder %s74, %s75
      %p87 = scmp.eq.s32.totalorder %s23, 1
      %p88 = por %p86, %p87
      %p90 = scmp.ne.s32.totalorder %s75, %s89
      %p91 = scmp.eq.s32.totalorder %s23, 0
      %p92 = por %p90, %p91
      %s93 = ssub.s32 %s17, %s24
      %p94 = scmp.eq.s32.totalorder %s93, 0
      %s96 = sadd.s32 %s95, 1
      %s97 = scalar_select %p94, %s95, %s96
      %p100 = pneg %p94
      %p101 = scmp.eq.s32.totalorder %s17, 1
      %p102 = por %p100, %p101
      %p103 = scmp.ne.s32.totalorder %s95, %s98
      %p104 = scmp.eq.s32.totalorder %s17, 0
      %p105 = por %p103, %p104
      %p106 = scmp.ne.s32.totalorder %s95, %s98
      %p107 = scmp.eq.s32.totalorder %s22, 1
      %p108 = por %p106, %p107
      %p109 = scmp.ne.s32.totalorder %s98, %s99
      %p110 = scmp.eq.s32.totalorder %s22, 0
      %p111 = por %p109, %p110
      %p112 = scmp.ne.s32.totalorder %s98, %s99
      %p113 = scmp.eq.s32.totalorder %s23, 1
      %p114 = por %p112, %p113
      %p116 = scmp.ne.s32.totalorder %s99, %s115
      %p117 = scmp.eq.s32.totalorder %s23, 0
      %p118 = por %p116, %p117
      %p119 = scmp.le.s32.totalorder 1, %s17
      %p120 = scmp.lt.s32.totalorder %s17, 3
      %p121 = pnand %p119, %p120
      %p122 = pneg %p121
      // Predicated region
      $region9: #{tpu_custom_call.1} parent=5 // pred_check
        _
      $region10: #{tpu_custom_call.1} parent=5 // pred_check_branch
        %124 = sbr.rel (%p121) target = $region12
      $region11: #{tpu_custom_call.1} parent=5 // pred_region
        %s125 = ssub.s32 %s17, 1
        // Predicated region
        $region13: #{tpu_custom_call.1} parent=11 // pred_check
          %p126 = pneg %p64
        $region14: #{tpu_custom_call.1} parent=11 // pred_check_branch
          %128 = sbr.rel (%p126) target = $region16
        $region15: #{tpu_custom_call.1} parent=11 // pred_region
          %s130 = ssub.s32 16, 16
          %131 = vsyncadd [#allocation5], %s130
          %s133 = sshll.u32 %s1, 4
          %s134 = int_to_ptr.vmem [resolvable:$true] %s133
          %136 = dma.vmem_to_smem %s134, 16, [#allocation6], [#allocation5]
        $region16: #{tpu_custom_call.1} parent=11 // pred_fallthru
          _
        // Predicated region
        $region17: #{tpu_custom_call.1} parent=11 // pred_check
          %p137 = pneg %p85
        $region18: #{tpu_custom_call.1} parent=11 // pred_check_branch
          %139 = sbr.rel (%p137) target = $region20
        $region19: #{tpu_custom_call.1} parent=11 // pred_region
          %s141 = ssub.s32 16, 16
          %142 = vsyncadd [#allocation8], %s141
          %s144 = sshll.u32 %s2, 4
          %s145 = int_to_ptr.vmem [resolvable:$true] %s144
          %147 = dma.vmem_to_smem %s145, 16, [#allocation7], [#allocation8]
        $region20: #{tpu_custom_call.1} parent=11 // pred_fallthru
          _
      $region12: #{tpu_custom_call.1} parent=5 // pred_fallthru
        _
      %p148 = scmp.lt.s32.totalorder %s17, 2
      // Predicated region
      $region21: #{tpu_custom_call.1} parent=5 // pred_check
        %p149 = pneg %p148
      $region22: #{tpu_custom_call.1} parent=5 // pred_check_branch
        %151 = sbr.rel (%p149) target = $region24
      $region23: #{tpu_custom_call.1} parent=5 // pred_region
        // Predicated region
        $region25: #{tpu_custom_call.1} parent=23 // pred_check
          %p152 = pneg %p37
        $region26: #{tpu_custom_call.1} parent=23 // pred_check_branch
          %154 = sbr.rel (%p152) target = $region28
        $region27: #{tpu_custom_call.1} parent=23 // pred_region
          %s155 = sand.u32 %s27, 1
          %s156 = scalar_lea.sflag [#allocation3], %s155
          %s157 = sand.u32 %s27, 1
          %s158 = smul.addr %s157, 64
          %s159 = scalar_lea.vmem [#allocation2], %s158
          %s161 = ssub.s32 1024, 1024
          %162 = vsyncadd %s156, %s161
          %s163 = smul.addr %s17, 8
          %s164 = smul.addr %s163, 128
          %s165 = scalar_lea.hbm %s0, %s164
          %s167 = sshll.u32 %s159, 4
          %s168 = int_to_ptr.vmem [resolvable:$true] %s167
          %170 = dma.hbm_to_vmem [thread:$0]  %s165, 1024, %s168, %s156
        $region28: #{tpu_custom_call.1} parent=23 // pred_fallthru
          _
      $region24: #{tpu_custom_call.1} parent=5 // pred_fallthru
        _
      %p171 = scmp.le.s32.totalorder 1, %s17
      %p172 = scmp.lt.s32.totalorder %s17, 3
      %p173 = pnand %p171, %p172
      %p174 = pneg %p173
      // Predicated region
      $region29: #{tpu_custom_call.1} parent=5 // pred_check
        _
      $region30: #{tpu_custom_call.1} parent=5 // pred_check_branch
        %176 = sbr.rel (%p173) target = $region32
      $region31: #{tpu_custom_call.1} parent=5 // pred_region
        %s177 = ssub.s32 %s17, 1
        %s178 = sand.u32 %s30, 1
        %s179 = scalar_lea.sflag [#allocation3], %s178
        %s180 = sand.u32 %s30, 1
        %s181 = smul.addr %s180, 64
        %s182 = scalar_lea.vmem [#allocation2], %s181
        // Predicated region
        $region33: #{tpu_custom_call.1} parent=31 // pred_check
          %p183 = pneg %p43
        $region34: #{tpu_custom_call.1} parent=31 // pred_check_branch
          %185 = sbr.rel (%p183) target = $region36
        $region35: #{tpu_custom_call.1} parent=31 // pred_region
          %186 = dma.done %s179, 1024
        $region36: #{tpu_custom_call.1} parent=31 // pred_fallthru
          _
        // Predicated region
        $region37: #{tpu_custom_call.1} parent=31 // pred_check
          %p187 = pneg %p64
        $region38: #{tpu_custom_call.1} parent=31 // pred_check_branch
          %189 = sbr.rel (%p187) target = $region40
        $region39: #{tpu_custom_call.1} parent=31 // pred_region
          %190 = dma.done [#allocation5], 16
        $region40: #{tpu_custom_call.1} parent=31 // pred_fallthru
          _
        // Predicated region
        $region41: #{tpu_custom_call.1} parent=31 // pred_check
          %p191 = pneg %p85
        $region42: #{tpu_custom_call.1} parent=31 // pred_check_branch
          %193 = sbr.rel (%p191) target = $region44
        $region43: #{tpu_custom_call.1} parent=31 // pred_region
          %194 = dma.done [#allocation8], 16
        $region44: #{tpu_custom_call.1} parent=31 // pred_fallthru
          _
        %195 = sfence
        %s196 = sand.u32 %s30, 1
        %s197 = scalar_lea.sflag [#allocation3], %s196
        %s198 = sand.u32 %s30, 1
        %s199 = smul.addr %s198, 64
        %s200 = scalar_lea.vmem [#allocation2], %s199
        %p201 = pneg %p43
        %p202 = pneg %p40
        %p203 = pneg %p64
        %p204 = pneg %p61
        %p205 = pneg %p85
        %p206 = pneg %p82
        %p207 = pneg %p111
        %p208 = pneg %p108
        %s209 = sand.u32 %s98, 1
        %s210 = scalar_lea.sflag [#allocation4], %s209
        %s211 = sand.u32 %s98, 1
        %s212 = smul.addr %s211, 256
        %s213 = scalar_lea.vmem [#allocation9], %s212
        %v214 = vld [vmem:[%s182] sm:$0xff]
        %v215 = vld [vmem:[%s182 + $0x8] sm:$0xff]
        %v216 = vld [vmem:[%s182 + $0x10] sm:$0xff]
        %v217 = vld [vmem:[%s182 + $0x18] sm:$0xff]
        %v218 = vld [vmem:[%s182 + $0x20] sm:$0xff]
        %v219 = vld [vmem:[%s182 + $0x28] sm:$0xff]
        %v220 = vld [vmem:[%s182 + $0x30] sm:$0xff]
        %v221 = vld [vmem:[%s182 + $0x38] sm:$0xff]
        %s222 = sld [smem:[#allocation6]]
        %v223 = vstv %s222
        %v224 = vsub.f32 %v214, %v223
        %v225 = vsub.f32 %v215, %v223
        %v226 = vsub.f32 %v216, %v223
        %v227 = vsub.f32 %v217, %v223
        %v228 = vsub.f32 %v218, %v223
        %v229 = vsub.f32 %v219, %v223
        %v230 = vsub.f32 %v220, %v223
        %v231 = vsub.f32 %v221, %v223
        %v232 = vmul.f32 %v224, %v224
        %v233 = vmul.f32 %v225, %v225
        %v234 = vmul.f32 %v226, %v226
        %v235 = vmul.f32 %v227, %v227
        %v236 = vmul.f32 %v228, %v228
        %v237 = vmul.f32 %v229, %v229
        %v238 = vmul.f32 %v230, %v230
        %v239 = vmul.f32 %v231, %v231
        %s240 = sld [smem:[#allocation7]]
        %v241 = vstv %s240
        %v242 = vmul.f32 %v232, %v241
        %v243 = vmul.f32 %v233, %v241
        %v244 = vmul.f32 %v234, %v241
        %v245 = vmul.f32 %v235, %v241
        %v246 = vmul.f32 %v236, %v241
        %v247 = vmul.f32 %v237, %v241
        %v248 = vmul.f32 %v238, %v241
        %v249 = vmul.f32 %v239, %v241
        %v250 = vmul.f32 %v242, 1.442695
        %v251 = vpow.pop %v250
        %v252 = vmul.f32 %v243, 1.442695
        %v253 = vpow.pop %v252
        %v254 = vmul.f32 %v244, 1.442695
        %v255 = vpow.pop %v254
        %v256 = vmul.f32 %v245, 1.442695
        %v257 = vpow.pop %v256
        %v258 = vmul.f32 %v246, 1.442695
        %v259 = vpow.pop %v258
        %v260 = vmul.f32 %v247, 1.442695
        %v261 = vpow.pop %v260
        %v262 = vmul.f32 %v248, 1.442695
        %v263 = vpow.pop %v262
        %v264 = vmul.f32 %v249, 1.442695
        %v265 = vpow.pop %v264
        %266 = vst [vmem:[%s213] sm:$0xff] %v251
        %267 = vst [vmem:[%s213 + $0x8] sm:$0xff] %v253
        %268 = vst [vmem:[%s213 + $0x10] sm:$0xff] %v255
        %269 = vst [vmem:[%s213 + $0x18] sm:$0xff] %v257
        %270 = vst [vmem:[%s213 + $0x20] sm:$0xff] %v259
        %271 = vst [vmem:[%s213 + $0x28] sm:$0xff] %v261
        %272 = vst [vmem:[%s213 + $0x30] sm:$0xff] %v263
        %273 = vst [vmem:[%s213 + $0x38] sm:$0xff] %v265
        %s274 = sld [smem:[#allocation6 + $0x1]]
        %v275 = vstv %s274
        %v276 = vsub.f32 %v214, %v275
        %v277 = vsub.f32 %v215, %v275
        %v278 = vsub.f32 %v216, %v275
        %v279 = vsub.f32 %v217, %v275
        %v280 = vsub.f32 %v218, %v275
        %v281 = vsub.f32 %v219, %v275
        %v282 = vsub.f32 %v220, %v275
        %v283 = vsub.f32 %v221, %v275
        %v284 = vmul.f32 %v276, %v276
        %v285 = vmul.f32 %v277, %v277
        %v286 = vmul.f32 %v278, %v278
        %v287 = vmul.f32 %v279, %v279
        %v288 = vmul.f32 %v280, %v280
        %v289 = vmul.f32 %v281, %v281
        %v290 = vmul.f32 %v282, %v282
        %v291 = vmul.f32 %v283, %v283
        %s292 = sld [smem:[#allocation7 + $0x1]]
        %v293 = vstv %s292
        %v294 = vmul.f32 %v284, %v293
        %v295 = vmul.f32 %v285, %v293
        %v296 = vmul.f32 %v286, %v293
        %v297 = vmul.f32 %v287, %v293
        %v298 = vmul.f32 %v288, %v293
        %v299 = vmul.f32 %v289, %v293
        %v300 = vmul.f32 %v290, %v293
        %v301 = vmul.f32 %v291, %v293
        %v302 = vmul.f32 %v294, 1.442695
        %v303 = vpow.pop %v302
        %v304 = vmul.f32 %v295, 1.442695
        %v305 = vpow.pop %v304
        %v306 = vmul.f32 %v296, 1.442695
        %v307 = vpow.pop %v306
        %v308 = vmul.f32 %v297, 1.442695
        %v309 = vpow.pop %v308
        %v310 = vmul.f32 %v298, 1.442695
        %v311 = vpow.pop %v310
        %v312 = vmul.f32 %v299, 1.442695
        %v313 = vpow.pop %v312
        %v314 = vmul.f32 %v300, 1.442695
        %v315 = vpow.pop %v314
        %v316 = vmul.f32 %v301, 1.442695
        %v317 = vpow.pop %v316
        %s318 = scalar_lea.vmem %s213, 64 [#allocation9]
        %319 = vst [vmem:[%s318] sm:$0xff] %v303
        %320 = vst [vmem:[%s318 + $0x8] sm:$0xff] %v305
        %321 = vst [vmem:[%s318 + $0x10] sm:$0xff] %v307
        %322 = vst [vmem:[%s318 + $0x18] sm:$0xff] %v309
        %323 = vst [vmem:[%s318 + $0x20] sm:$0xff] %v311
        %324 = vst [vmem:[%s318 + $0x28] sm:$0xff] %v313
        %325 = vst [vmem:[%s318 + $0x30] sm:$0xff] %v315
        %326 = vst [vmem:[%s318 + $0x38] sm:$0xff] %v317
        %s327 = sld [smem:[#allocation6 + $0x2]]
        %v328 = vstv %s327
        %v329 = vsub.f32 %v214, %v328
        %v330 = vsub.f32 %v215, %v328
        %v331 = vsub.f32 %v216, %v328
        %v332 = vsub.f32 %v217, %v328
        %v333 = vsub.f32 %v218, %v328
        %v334 = vsub.f32 %v219, %v328
        %v335 = vsub.f32 %v220, %v328
        %v336 = vsub.f32 %v221, %v328
        %v337 = vmul.f32 %v329, %v329
        %v338 = vmul.f32 %v330, %v330
        %v339 = vmul.f32 %v331, %v331
        %v340 = vmul.f32 %v332, %v332
        %v341 = vmul.f32 %v333, %v333
        %v342 = vmul.f32 %v334, %v334
        %v343 = vmul.f32 %v335, %v335
        %v344 = vmul.f32 %v336, %v336
        %s345 = sld [smem:[#allocation7 + $0x2]]
        %v346 = vstv %s345
        %v347 = vmul.f32 %v337, %v346
        %v348 = vmul.f32 %v338, %v346
        %v349 = vmul.f32 %v339, %v346
        %v350 = vmul.f32 %v340, %v346
        %v351 = vmul.f32 %v341, %v346
        %v352 = vmul.f32 %v342, %v346
        %v353 = vmul.f32 %v343, %v346
        %v354 = vmul.f32 %v344, %v346
        %v355 = vmul.f32 %v347, 1.442695
        %v356 = vpow.pop %v355
        %v357 = vmul.f32 %v348, 1.442695
        %v358 = vpow.pop %v357
        %v359 = vmul.f32 %v349, 1.442695
        %v360 = vpow.pop %v359
        %v361 = vmul.f32 %v350, 1.442695
        %v362 = vpow.pop %v361
        %v363 = vmul.f32 %v351, 1.442695
        %v364 = vpow.pop %v363
        %v365 = vmul.f32 %v352, 1.442695
        %v366 = vpow.pop %v365
        %v367 = vmul.f32 %v353, 1.442695
        %v368 = vpow.pop %v367
        %v369 = vmul.f32 %v354, 1.442695
        %v370 = vpow.pop %v369
        %s371 = scalar_lea.vmem %s213, 128 [#allocation9]
        %372 = vst [vmem:[%s371] sm:$0xff] %v356
        %373 = vst [vmem:[%s371 + $0x8] sm:$0xff] %v358
        %374 = vst [vmem:[%s371 + $0x10] sm:$0xff] %v360
        %375 = vst [vmem:[%s371 + $0x18] sm:$0xff] %v362
        %376 = vst [vmem:[%s371 + $0x20] sm:$0xff] %v364
        %377 = vst [vmem:[%s371 + $0x28] sm:$0xff] %v366
        %378 = vst [vmem:[%s371 + $0x30] sm:$0xff] %v368
        %379 = vst [vmem:[%s371 + $0x38] sm:$0xff] %v370
        %s380 = sld [smem:[#allocation6 + $0x3]]
        %v381 = vstv %s380
        %v382 = vsub.f32 %v214, %v381
        %v383 = vsub.f32 %v215, %v381
        %v384 = vsub.f32 %v216, %v381
        %v385 = vsub.f32 %v217, %v381
        %v386 = vsub.f32 %v218, %v381
        %v387 = vsub.f32 %v219, %v381
        %v388 = vsub.f32 %v220, %v381
        %v389 = vsub.f32 %v221, %v381
        %v390 = vmul.f32 %v382, %v382
        %v391 = vmul.f32 %v383, %v383
        %v392 = vmul.f32 %v384, %v384
        %v393 = vmul.f32 %v385, %v385
        %v394 = vmul.f32 %v386, %v386
        %v395 = vmul.f32 %v387, %v387
        %v396 = vmul.f32 %v388, %v388
        %v397 = vmul.f32 %v389, %v389
        %s398 = sld [smem:[#allocation7 + $0x3]]
        %v399 = vstv %s398
        %v400 = vmul.f32 %v390, %v399
        %v401 = vmul.f32 %v391, %v399
        %v402 = vmul.f32 %v392, %v399
        %v403 = vmul.f32 %v393, %v399
        %v404 = vmul.f32 %v394, %v399
        %v405 = vmul.f32 %v395, %v399
        %v406 = vmul.f32 %v396, %v399
        %v407 = vmul.f32 %v397, %v399
        %v408 = vmul.f32 %v400, 1.442695
        %v409 = vpow.pop %v408
        %v410 = vmul.f32 %v401, 1.442695
        %v411 = vpow.pop %v410
        %v412 = vmul.f32 %v402, 1.442695
        %v413 = vpow.pop %v412
        %v414 = vmul.f32 %v403, 1.442695
        %v415 = vpow.pop %v414
        %v416 = vmul.f32 %v404, 1.442695
        %v417 = vpow.pop %v416
        %v418 = vmul.f32 %v405, 1.442695
        %v419 = vpow.pop %v418
        %v420 = vmul.f32 %v406, 1.442695
        %v421 = vpow.pop %v420
        %v422 = vmul.f32 %v407, 1.442695
        %v423 = vpow.pop %v422
        %s424 = scalar_lea.vmem %s213, 192 [#allocation9]
        %425 = vst [vmem:[%s424] sm:$0xff] %v409
        %426 = vst [vmem:[%s424 + $0x8] sm:$0xff] %v411
        %427 = vst [vmem:[%s424 + $0x10] sm:$0xff] %v413
        %428 = vst [vmem:[%s424 + $0x18] sm:$0xff] %v415
        %429 = vst [vmem:[%s424 + $0x20] sm:$0xff] %v417
        %430 = vst [vmem:[%s424 + $0x28] sm:$0xff] %v419
        %431 = vst [vmem:[%s424 + $0x30] sm:$0xff] %v421
        %432 = vst [vmem:[%s424 + $0x38] sm:$0xff] %v423
        %s433 = sand.u32 %s98, 1
        %s434 = scalar_lea.sflag [#allocation4], %s433
        %s435 = sand.u32 %s98, 1
        %s436 = smul.addr %s435, 256
        %s437 = scalar_lea.vmem [#allocation9], %s436
        // Predicated region
        $region45: #{tpu_custom_call.1} parent=31 // pred_check
          %p438 = pneg %p108
        $region46: #{tpu_custom_call.1} parent=31 // pred_check_branch
          %440 = sbr.rel (%p438) target = $region48
        $region47: #{tpu_custom_call.1} parent=31 // pred_region
          %s442 = ssub.s32 4096, 4096
          %443 = vsyncadd %s434, %s442
          %s444 = smul.addr %s22, 8
          %s445 = smul.addr %s444, 128
          %s446 = scalar_lea.hbm %s3, %s445
          %s447 = sshll.u32 %s437, 4
          %s448 = int_to_ptr.vmem [resolvable:$true] %s447
          %453 = dma.vmem_to_hbm [thread:$0]  %s448, 4096, %s446, %s434, 1024, 2048, 64
        $region48: #{tpu_custom_call.1} parent=31 // pred_fallthru
          _
      $region32: #{tpu_custom_call.1} parent=5 // pred_fallthru
        _
      %p454 = scmp.le.s32.totalorder 2, %s17
      // Predicated region
      $region49: #{tpu_custom_call.1} parent=5 // pred_check
        %p455 = pneg %p454
      $region50: #{tpu_custom_call.1} parent=5 // pred_check_branch
        %457 = sbr.rel (%p455) target = $region52
      $region51: #{tpu_custom_call.1} parent=5 // pred_region
        %s458 = ssub.s32 %s17, 2
        // Predicated region
        $region53: #{tpu_custom_call.1} parent=51 // pred_check
          %p459 = pneg %p114
        $region54: #{tpu_custom_call.1} parent=51 // pred_check_branch
          %461 = sbr.rel (%p459) target = $region56
        $region55: #{tpu_custom_call.1} parent=51 // pred_region
          %s462 = sand.u32 %s99, 1
          %s463 = scalar_lea.sflag [#allocation4], %s462
          %s464 = sand.u32 %s99, 1
          %s465 = smul.addr %s464, 256
          %s466 = scalar_lea.vmem [#allocation9], %s465
          %467 = dma.done %s463, 4096
        $region56: #{tpu_custom_call.1} parent=51 // pred_fallthru
          _
      $region52: #{tpu_custom_call.1} parent=5 // pred_fallthru
        _
    $region6: #{tpu_custom_call.1} parent=1 // loop_footer
      %s21 = sadd.s32 1, %s17
    $region7: #{tpu_custom_call.1} parent=1 // loop_footer_branch
      %16 = sbr.rel target = $region3
    $region8: #{tpu_custom_call.1} parent=1 // loop_exit
      _
    %468 = vsyncpa [#allocation3], 1
    %s469 = scalar_lea.sflag [#allocation3], 1
    %470 = vsyncpa %s469, 1
    %471 = vsyncpa [#allocation4], 1
    %s472 = scalar_lea.sflag [#allocation4], 1
    %473 = vsyncpa %s472, 1
    %474 = vsyncpa [#allocation5], 1
    %s475 = scalar_lea.sflag [#allocation5], 1
    %476 = vsyncpa %s475, 1
    %477 = vsyncpa [#allocation8], 1

</llo_original>
